<compile_context>
chip_gen: v5e
topology: v5e:2x2
jax: 0.10.0
libtpu: 0.0.40
codegen_flags: <defaults>
</compile_context>

<pallas_src>
import functools
import math

import jax
import jax.numpy as jnp
from jax.experimental import pallas as pl
from jax.experimental.pallas import tpu as pltpu


def _round_up(v, m):
    return (v + m - 1) // m * m


def _device_tile_config():
    """Generation-specific tile caps / VMEM limits (roofline-derived)."""
    try:
        kind = jax.devices()[0].device_kind.lower()
    except Exception:
        kind = ""
    if "v5 lite" in kind or "v5e" in kind:
        # v5e needs ~240 flops/byte; bf16 512x512 already saturates the MXU.
        return dict(tm_cap=512, tn_cap=512, tk_cap=512,
                    vmem_limit=64 * 1024 * 1024, two_cores=False)
    if "v6" in kind:
        # v6e needs ~680 flops/byte -> 1024x2048 bf16 tiles; raise VMEM limit
        # above the 32 MiB scoped default (128 MiB physical).
        return dict(tm_cap=1024, tn_cap=2048, tk_cap=512,
                    vmem_limit=100 * 1024 * 1024, two_cores=False)
    if "7" in kind:
        # v7x needs only ~310 flops/byte; 1024x1024 hits the roofline and
        # stays well inside the 64 MiB per-TC VMEM.
        return dict(tm_cap=1024, tn_cap=1024, tk_cap=512,
                    vmem_limit=48 * 1024 * 1024, two_cores=True)
    # Unknown generation: conservative middle ground.
    return dict(tm_cap=1024, tn_cap=1024, tk_cap=512,
                vmem_limit=64 * 1024 * 1024, two_cores=False)


def _choose_tiles(B, O, H, cfg):
    # bf16 packs 2 rows/sublane -> round M to 16; lanes (N, K) to 128.
    tm = min(cfg["tm_cap"], _round_up(B, 16))
    tn = min(cfg["tn_cap"], _round_up(O, 128))
    tk = min(cfg["tk_cap"], _round_up(H, 128))

    Mp = _round_up(B, tm)
    Np = _round_up(O, tn)
    Kp = _round_up(H, tk)

    # Typical Linear: weight >> activation. If the whole padded batch fits
    # under the tm cap, take tm = Mp so weight HBM traffic = Kp*Np (one pass).
    if Mp <= cfg["tm_cap"]:
        tm = Mp

    # v7x has 2 TensorCores per chip: make sure at least one parallel axis
    # has >= 2 blocks so the second core is not idle (no-op on v5e/v6e).
    if cfg["two_cores"] and (Mp // tm) == 1 and (Np // tn) == 1:
        if tn >= 256:
            tn = max(128, (tn // 2) // 128 * 128)
            Np = _round_up(O, tn)
        elif tm >= 32:
            tm = max(16, (tm // 2) // 16 * 16)
            Mp = _round_up(B, tm)

    return tm, tn, tk, Mp, Np, Kp


def _linear_kernel(x_ref, w_ref, b_ref, o_ref):
    """One (i, j, k) grid step of y = x @ W.T + b.

    x_ref: (tm, tk) bf16 activation tile
    w_ref: (tk, tn) bf16 weight tile, pre-transposed [H, O] layout
    b_ref: (1,  tn) f32 bias tile
    o_ref: (tm, tn) f32 output tile, resident across the K axis (accumulator)
    """
    k = pl.program_id(2)

    @pl.when(k == 0)
    def _():
        o_ref[...] = jnp.zeros_like(o_ref)

    # bf16 x bf16 -> f32 accumulation on the MXU; contraction is (k, n) on a
    # pre-transposed weight, so no in-kernel XLU transpose is emitted.
    o_ref[...] += jnp.dot(x_ref[...], w_ref[...],
                          preferred_element_type=jnp.float32)

    @pl.when(k == pl.num_programs(2) - 1)
    def _():
        # Bias added exactly once, in the finalize step (cheap VPU work).
        o_ref[...] += b_ref[...]


def prepare_linear_params(weight, bias, *, Np, Kp, param_dtype=jnp.bfloat16):
    """One-time (init-time) parameter prep, hoisted out of the per-call path:
    pad [O, H] weight to tile multiples, transpose to [Kp, Np], cast to bf16.
    """
    O, H = weight.shape
    w_p = jnp.pad(weight, ((0, Np - O), (0, Kp - H))).T.astype(param_dtype)
    b_p = jnp.pad(bias, (0, Np - O)).astype(jnp.float32).reshape(1, Np)
    return w_p, b_p


@functools.partial(
    jax.jit, static_argnames=("tm", "tn", "tk", "B", "O", "vmem_limit"))
def _forward_impl(x2, w_p, b_p, *, tm, tn, tk, B, O, vmem_limit):
    Kp, Np = w_p.shape
    H = x2.shape[-1]
    Mp = _round_up(B, tm)

    # Activation padding + bf16 cast per call (cheap relative to the weight).
    x_p = jnp.pad(x2, ((0, Mp - B), (0, Kp - H))).astype(jnp.bfloat16)

    grid = (Mp // tm, Np // tn, Kp // tk)

    # Truthful traffic estimate: x is re-streamed once per N block, W once per
    # M block, f32 output written once. Uses per-operand itemsize.
    bytes_accessed = (
        x_p.size * x_p.dtype.itemsize * (Np // tn)
        + w_p.size * w_p.dtype.itemsize * (Mp // tm)
        + b_p.size * b_p.dtype.itemsize * (Mp // tm)
        + Mp * Np * 4
    )
    cost = pl.CostEstimate(flops=2 * Mp * Np * Kp, transcendentals=0,
                           bytes_accessed=bytes_accessed)

    out_p = pl.pallas_call(
        _linear_kernel,
        out_shape=jax.ShapeDtypeStruct((Mp, Np), jnp.float32),
        grid_spec=pltpu.PrefetchScalarGridSpec(
            num_scalar_prefetch=0,
            grid=grid,
            in_specs=[
                pl.BlockSpec((tm, tk), lambda i, j, k: (i, k)),  # x tile
                pl.BlockSpec((tk, tn), lambda i, j, k: (k, j)),  # W.T tile
                pl.BlockSpec((1, tn), lambda i, j, k: (0, j)),   # bias tile
            ],
            out_specs=pl.BlockSpec((tm, tn), lambda i, j, k: (i, j)),
        ),
        compiler_params=pltpu.CompilerParams(
            dimension_semantics=("parallel", "parallel", "arbitrary"),
            vmem_limit_bytes=vmem_limit,
        ),
        cost_estimate=cost,
    )(x_p, w_p, b_p)

    return out_p[:B, :O]


def linear_forward(x, weight, bias):
    """nn.Linear forward. x: [..., H], weight: [O, H], bias: [O] -> [..., O]."""
    O, H = weight.shape
    assert x.shape[-1] == H, "x last dim must equal hidden_dim"
    lead = x.shape[:-1]
    B = math.prod(lead) if lead else 1

    cfg = _device_tile_config()
    tm, tn, tk, Mp, Np, Kp = _choose_tiles(B, O, H, cfg)

    # In a real model this prep happens once at parameter init; it is kept
    # separate from the jitted per-call path on purpose.
    w_p, b_p = prepare_linear_params(weight, bias, Np=Np, Kp=Kp)

    out = _forward_impl(x.reshape(B, H), w_p, b_p, tm=tm, tn=tn, tk=tk,
                        B=B, O=O, vmem_limit=cfg["vmem_limit"])
    return out.reshape(*lead, O) if lead else out.reshape(O)


if __name__ == "__main__":
    hidden_dim, output_dim = 32, 16
    batch = 8

    key = jax.random.PRNGKey(0)
    kx, kw, kb = jax.random.split(key, 3)

    # Deterministic synthetic parameters (same shapes as nn.Linear(32, 16)).
    x = jax.random.normal(kx, (batch, hidden_dim), dtype=jnp.float32)
    weight = jax.random.normal(kw, (output_dim, hidden_dim), dtype=jnp.float32) * 0.1
    bias = jax.random.normal(kb, (output_dim,), dtype=jnp.float32) * 0.1

    out = linear_forward(x, weight, bias)
    jax.block_until_ready(out)

    # Correctness check against plain f32 JAX reference. Tolerance is loosened
    # because inputs are intentionally cast to bf16 (f32 accumulation).
    ref = x @ weight.T + bias
    assert out.shape == (batch, output_dim)
    assert jnp.allclose(out, ref, atol=2e-2, rtol=2e-2)

    print("KERNEL_OK")
</pallas_src>

<mosaic_0001>
module attributes {stable_mosaic.version = 11 : i64} {
  func.func @_linear_kernel(%arg0: i32, %arg1: i32, %arg2: i32, %arg3: memref<16x128xbf16, #tpu.memory_space<vmem>>, %arg4: memref<128x128xbf16, #tpu.memory_space<vmem>>, %arg5: memref<1x128xf32, #tpu.memory_space<vmem>>, %arg6: memref<16x128xf32, #tpu.memory_space<vmem>>) attributes {dimension_semantics = [#tpu.dimension_semantics<parallel>, #tpu.dimension_semantics<parallel>, #tpu.dimension_semantics<arbitrary>], iteration_bounds = array<i64: 1, 1, 1>, scalar_prefetch = 0 : i64, scratch_operands = 0 : i64, tpu.core_type = #tpu.core_type<tc>, window_params = [{transform_indices = @transform_0, window_bounds = array<i64: 16, 128>}, {transform_indices = @transform_1, window_bounds = array<i64: 128, 128>}, {transform_indices = @transform_2, window_bounds = array<i64: 1, 128>}, {transform_indices = @transform_3, window_bounds = array<i64: 16, 128>}]} {
    %c0_i32 = arith.constant 0 : i32
    %0 = arith.cmpi eq, %arg2, %c0_i32 : i32
    %1 = arith.extui %0 : i1 to i32
    %c0_i32_0 = arith.constant 0 : i32
    %2 = arith.cmpi ne, %1, %c0_i32_0 : i32
    scf.if %2 {
      %cst_10 = arith.constant 0.000000e+00 : f32
      %12 = vector.broadcast %cst_10 : f32 to vector<16x128xf32>
      %c0_11 = arith.constant 0 : index
      %c0_12 = arith.constant 0 : index
      %13 = vector.load %arg6[%c0_11, %c0_12] : memref<16x128xf32, #tpu.memory_space<vmem>>, vector<16x128xf32>
      tpu.vector_store %arg6[%c0_11, %c0_12], %12 {strides = array<i32>} : memref<16x128xf32, #tpu.memory_space<vmem>>, vector<16x128xf32>,
    } else {
    }
    %c0 = arith.constant 0 : index
    %c0_1 = arith.constant 0 : index
    %3 = vector.load %arg6[%c0, %c0_1] : memref<16x128xf32, #tpu.memory_space<vmem>>, vector<16x128xf32>
    %c0_2 = arith.constant 0 : index
    %c0_3 = arith.constant 0 : index
    %4 = vector.load %arg3[%c0_2, %c0_3] : memref<16x128xbf16, #tpu.memory_space<vmem>>, vector<16x128xbf16>
    %c0_4 = arith.constant 0 : index
    %c0_5 = arith.constant 0 : index
    %5 = vector.load %arg4[%c0_4, %c0_5] : memref<128x128xbf16, #tpu.memory_space<vmem>>, vector<128x128xbf16>
    %cst = arith.constant dense<0.000000e+00> : vector<16x128xf32>
    %6 = tpu.matmul %4, %5, %cst {dimension_numbers = #tpu.dot_dimension_numbers<[1], [0], [0], [1], [0, 0, 1, 1], [], []>} : vector<16x128xbf16>, vector<128x128xbf16>, vector<16x128xf32> -> vector<16x128xf32>
    %7 = arith.addf %3, %6 : vector<16x128xf32>
    %c0_6 = arith.constant 0 : index
    %c0_7 = arith.constant 0 : index
    %8 = vector.load %arg6[%c0_6, %c0_7] : memref<16x128xf32, #tpu.memory_space<vmem>>, vector<16x128xf32>
    tpu.vector_store %arg6[%c0_6, %c0_7], %7 {strides = array<i32>} : memref<16x128xf32, #tpu.memory_space<vmem>>, vector<16x128xf32>,
    %c0_i32_8 = arith.constant 0 : i32
    %9 = arith.cmpi eq, %arg2, %c0_i32_8 : i32
    %10 = arith.extui %9 : i1 to i32
    %c0_i32_9 = arith.constant 0 : i32
    %11 = arith.cmpi ne, %10, %c0_i32_9 : i32
    scf.if %11 {
      %c0_10 = arith.constant 0 : index
      %c0_11 = arith.constant 0 : index
      %12 = vector.load %arg6[%c0_10, %c0_11] : memref<16x128xf32, #tpu.memory_space<vmem>>, vector<16x128xf32>
      %c0_12 = arith.constant 0 : index
      %c0_13 = arith.constant 0 : index
      %13 = vector.load %arg5[%c0_12, %c0_13] : memref<1x128xf32, #tpu.memory_space<vmem>>, vector<1x128xf32>
      %14 = vector.broadcast %13 : vector<1x128xf32> to vector<16x128xf32>
      %15 = arith.addf %12, %14 : vector<16x128xf32>
      %c0_14 = arith.constant 0 : index
      %c0_15 = arith.constant 0 : index
      %16 = vector.load %arg6[%c0_14, %c0_15] : memref<16x128xf32, #tpu.memory_space<vmem>>, vector<16x128xf32>
      tpu.vector_store %arg6[%c0_14, %c0_15], %15 {strides = array<i32>} : memref<16x128xf32, #tpu.memory_space<vmem>>, vector<16x128xf32>,
    } else {
    }
    return
  }
  func.func @transform_0(%arg0: i32, %arg1: i32, %arg2: i32) -> (i32, i32) {
    %c0_i32 = arith.constant 0 : i32
    return %arg0, %arg2 : i32, i32
  }
  func.func @transform_1(%arg0: i32, %arg1: i32, %arg2: i32) -> (i32, i32) {
    %c0_i32 = arith.constant 0 : i32
    return %arg2, %arg1 : i32, i32
  }
  func.func @transform_2(%arg0: i32, %arg1: i32, %arg2: i32) -> (i32, i32) {
    %c0_i32 = arith.constant 0 : i32
    %c0_i32_0 = arith.constant 0 : i32
    return %c0_i32, %arg1 : i32, i32
  }
  func.func @transform_3(%arg0: i32, %arg1: i32, %arg2: i32) -> (i32, i32) {
    %c0_i32 = arith.constant 0 : i32
    return %arg0, %arg1 : i32, i32
  }
}

</mosaic_0001>

<llo_original>
// kernel: _forward_impl.1
$region0: #{_forward_impl.1}
  #allocation0 [shape = 'u32[]', space=smem, size = 0x4, offset = 0x4, fixed_abs, tag = 'smem constant byte address 0x4 - core index']
  #allocation1 [shape = 'u32[72,128]{1,0:T(1,128)}', space=vmem, size = 0x9000, scoped, tag = 'internal scratch']
  %s0 = inlined_call_operand.vmem [shape: bf16[16,128], index: 0, kind: input, shape index: {}]
  %s1 = inlined_call_operand.hbm [shape: bf16[128,128], index: 1, kind: input, shape index: {}]
  %s2 = inlined_call_operand.vmem [shape: f32[1,128], index: 2, kind: input, shape index: {}]
  %s3 = inlined_call_operand.vmem [shape: f32[16,128], index: 3, kind: output, shape index: {}]
  %s4 = sld [smem:[#allocation0]]
  $region34: #{_forward_impl.1} parent=0
    _
  %s6 = ssub.s32 1, %s4
  %s7 = scalar_select 0, %s6, %s4
  $region1: #{_forward_impl.1} parent=0
    #allocation2 [shape = 'u8[32768]{0}', space=vmem, size = 0x8000, scoped, tag = 'input window, operand 1, single buffered']
    #allocation3 [shape = 's32[1]{0}', space=sflag, size = 0x4, scoped, tag = 'scoped memory for _forward_impl.1']
    %8 = vsyncpa [#allocation3], 0
    // Predicated region
    $region2: #{_forward_impl.1} parent=1 // pred_check
      _
    $region3: #{_forward_impl.1} parent=1 // pred_check_branch
      %10 = sbr.rel (0) target = $region5
    $region4: #{_forward_impl.1} parent=1 // pred_region
      _
    $region5: #{_forward_impl.1} parent=1 // pred_fallthru
      _
    // Predicated region
    $region6: #{_forward_impl.1} parent=1 // pred_check
      _
    $region7: #{_forward_impl.1} parent=1 // pred_check_branch
      %12 = sbr.rel (0) target = $region9
    $region8: #{_forward_impl.1} parent=1 // pred_region
      %14 = vsyncadd [#allocation3], 0
      %s15 = sshll.u32 %s1, 4
      %s16 = int_to_ptr.hbm [resolvable:$true] %s15
      %s17 = sshll.u32 [#allocation2], 4
      %s18 = int_to_ptr.vmem [resolvable:$true] %s17
      %23 = dma.hbm_to_vmem [thread:$0]  %s16, 1024, %s18, [#allocation3], 64, 64, 4
    $region9: #{_forward_impl.1} parent=1 // pred_fallthru
      _
    // Predicated region
    $region10: #{_forward_impl.1} parent=1 // pred_check
      _
    $region11: #{_forward_impl.1} parent=1 // pred_check_branch
      %25 = sbr.rel (0) target = $region13
    $region12: #{_forward_impl.1} parent=1 // pred_region
      _
    $region13: #{_forward_impl.1} parent=1 // pred_fallthru
      _
    // Predicated region
    $region14: #{_forward_impl.1} parent=1 // pred_check
      _
    $region15: #{_forward_impl.1} parent=1 // pred_check_branch
      %27 = sbr.rel (0) target = $region17
    $region16: #{_forward_impl.1} parent=1 // pred_region
      %29 = dma.done [#allocation3], 1024
    $region17: #{_forward_impl.1} parent=1 // pred_fallthru
      _
    %p30 = scmp.eq.s32.totalorder 0, 0
    // Predicated region
    $region18: #{_forward_impl.1} parent=1 // pred_check
      %p31 = pneg %p30
    $region19: #{_forward_impl.1} parent=1 // pred_check_branch
      %33 = sbr.rel (%p31) target = $region21
    $region20: #{_forward_impl.1} parent=1 // pred_region
      %34 = vst [vmem:[%s3] sm:$0xff] 0.0
      %35 = vst [vmem:[%s3 + $0x8] sm:$0xff] 0.0
    $region21: #{_forward_impl.1} parent=1 // pred_fallthru
      _
    %v36 = vld [vmem:[%s3] sm:$0xff]
    %v37 = vld [vmem:[%s3 + $0x8] sm:$0xff]
    %v38 = vld [vmem:[%s0] sm:$0xf]
    %v39 = vld [vmem:[%s0 + $0x4] sm:$0xf]
    %v40 = vld [vmem:[#allocation2] sm:$0xf]
    %v41 = vld [vmem:[#allocation2 + $0x4] sm:$0xf]
    %v42 = vld [vmem:[#allocation2 + $0x8] sm:$0xf]
    %v43 = vld [vmem:[#allocation2 + $0xc] sm:$0xf]
    %v44 = vld [vmem:[#allocation2 + $0x10] sm:$0xf]
    %v45 = vld [vmem:[#allocation2 + $0x14] sm:$0xf]
    %v46 = vld [vmem:[#allocation2 + $0x18] sm:$0xf]
    %v47 = vld [vmem:[#allocation2 + $0x1c] sm:$0xf]
    %v48 = vld [vmem:[#allocation2 + $0x20] sm:$0xf]
    %v49 = vld [vmem:[#allocation2 + $0x24] sm:$0xf]
    %v50 = vld [vmem:[#allocation2 + $0x28] sm:$0xf]
    %v51 = vld [vmem:[#allocation2 + $0x2c] sm:$0xf]
    %v52 = vld [vmem:[#allocation2 + $0x30] sm:$0xf]
    %v53 = vld [vmem:[#allocation2 + $0x34] sm:$0xf]
    %v54 = vld [vmem:[#allocation2 + $0x38] sm:$0xf]
    %v55 = vld [vmem:[#allocation2 + $0x3c] sm:$0xf]
    %v58 = vunpack.c.l.b16 %v38
    %v59 = vunpack.c.l.b16 %v39
    %v60 = vpack.c.b16 %v59, %v58
    %v78 = vunpack.c.l.b16 %v40
    %v79 = vunpack.c.l.b16 %v41
    %v80 = vunpack.c.l.b16 %v42
    %v81 = vunpack.c.l.b16 %v43
    %v82 = vunpack.c.l.b16 %v44
    %v83 = vunpack.c.l.b16 %v45
    %v84 = vunpack.c.l.b16 %v46
    %v85 = vunpack.c.l.b16 %v47
    %v86 = vunpack.c.l.b16 %v48
    %v87 = vunpack.c.l.b16 %v49
    %v88 = vunpack.c.l.b16 %v50
    %v89 = vunpack.c.l.b16 %v51
    %v90 = vunpack.c.l.b16 %v52
    %v91 = vunpack.c.l.b16 %v53
    %v92 = vunpack.c.l.b16 %v54
    %v93 = vunpack.c.l.b16 %v55
    %v94 = vpack.c.b16 %v79, %v78
    %v95 = vpack.c.b16 %v81, %v80
    %v96 = vpack.c.b16 %v83, %v82
    %v97 = vpack.c.b16 %v85, %v84
    %v98 = vpack.c.b16 %v87, %v86
    %v99 = vpack.c.b16 %v89, %v88
    %v100 = vpack.c.b16 %v91, %v90
    %v101 = vpack.c.b16 %v93, %v92
    %110 = vmatpush.bf16.msra.mxu0 %v101
    %111 = vmatpush.bf16.msra.mxu0 %v100
    %112 = vmatpush.bf16.msra.mxu0 %v99
    %113 = vmatpush.bf16.msra.mxu0 %v98
    %114 = vmatpush.bf16.msra.mxu0 %v97
    %115 = vmatpush.bf16.msra.mxu0 %v96
    %116 = vmatpush.bf16.msra.mxu0 %v95
    %117 = vmatpush.bf16.msra.mxu0 %v94
    %118 = vmatmul.bf16.gmra.mxu0 %v60
    %v119 = vpop.f32.mrf.mxu0
    %v120 = vadd.f32 0.0, %v119
    %v121 = vpop.f32.mrf.mxu0
    %v122 = vadd.f32 0.0, %v121
    %123 = vdwg.mxu0
    %v124 = vadd.f32 %v36, %v120
    %v125 = vadd.f32 %v37, %v122
    %126 = vst [vmem:[%s3] sm:$0xff] %v124
    %127 = vst [vmem:[%s3 + $0x8] sm:$0xff] %v125
    // Predicated region
    $region22: #{_forward_impl.1} parent=1 // pred_check
      %p128 = pneg %p30
    $region23: #{_forward_impl.1} parent=1 // pred_check_branch
      %130 = sbr.rel (%p128) target = $region25
    $region24: #{_forward_impl.1} parent=1 // pred_region
      %v131 = vld [vmem:[%s3] sm:$0xff]
      %v132 = vld [vmem:[%s3 + $0x8] sm:$0xff]
      %v133 = vld [vmem:[%s2] sm:$0x1]
      %v135 = vperm.slane %v133, 0
      %v137 = vadd.f32 %v131, %v135
      %v138 = vadd.f32 %v132, %v135
      %139 = vst [vmem:[%s3] sm:$0xff] %v137
      %140 = vst [vmem:[%s3 + $0x8] sm:$0xff] %v138
    $region25: #{_forward_impl.1} parent=1 // pred_fallthru
      _
    // Predicated region
    $region26: #{_forward_impl.1} parent=1 // pred_check
      _
    $region27: #{_forward_impl.1} parent=1 // pred_check_branch
      %142 = sbr.rel (0) target = $region29
    $region28: #{_forward_impl.1} parent=1 // pred_region
      _
    $region29: #{_forward_impl.1} parent=1 // pred_fallthru
      _
    // Predicated region
    $region30: #{_forward_impl.1} parent=1 // pred_check
      _
    $region31: #{_forward_impl.1} parent=1 // pred_check_branch
      %144 = sbr.rel (0) target = $region33
    $region32: #{_forward_impl.1} parent=1 // pred_region
      _
    $region33: #{_forward_impl.1} parent=1 // pred_fallthru
      _
    %145 = vsyncpa [#allocation3], 1

</llo_original>
